<compile_context>
chip_gen: v7x
topology: tpu7x:2x2x1
jax: 0.10.0
libtpu: 0.0.40
codegen_flags: <defaults>
</compile_context>

<pallas_src>
import math

import numpy as np
import jax
import jax.numpy as jnp
from jax import lax
from jax.experimental import pallas as pl
from jax.experimental.pallas import tpu as pltpu


# ----------------------------------------------------------------------------
# Fused kernel
# ----------------------------------------------------------------------------
_PACKED_KEYS = ("w1", "b1", "w2", "b2", "w3", "b3", "w4", "b4",
                "wfc", "bfc", "m28", "m16", "s1", "s2")


def _make_kernel(neg_shift: bool):
    """neg_shift=True means pltpu.roll follows jnp.roll semantics."""

    def shift(a, s, hw):
        # returns b with b[..., f] = a[..., (f + s) mod hw]
        amt = ((-s) if neg_shift else s) % hw
        if amt == 0:
            return a
        return pltpu.roll(a, amt, axis=1)

    def conv(a, w_ref, b_ref, ksize, stride, hw, vmask):
        # a: (Cin, hw); w_ref: (ksize*ksize, Cout, Cin); returns (Cout, hw)
        cout = w_ref.shape[1]
        cin = w_ref.shape[2]
        p = ksize // 2
        acc = jnp.zeros((cout, hw), jnp.float32)
        t = 0
        for dy in range(-p, p + 1):
            for dx in range(-p, p + 1):
                sh = shift(a, dy * stride + dx, hw)
                if cin == 1:
                    # (Cout,1) * (1,hw) broadcast (avoids a K=1 matmul)
                    acc = acc + w_ref[t] * sh
                else:
                    acc = acc + jnp.dot(w_ref[t], sh,
                                        preferred_element_type=jnp.float32)
                t += 1
        acc = jnp.maximum(acc + b_ref[...], 0.0)
        return acc * vmask          # keep the dead border rows/cols at zero

    def pool(a, stride, hw, s_ref):
        # max over each 2x2 window, then gather window top-lefts via 0/1 matmul
        m = a
        for off in (1, stride, stride + 1):
            m = jnp.maximum(m, shift(a, off, hw))
        return jnp.dot(m, s_ref[...], preferred_element_type=jnp.float32)

    def kernel(x_ref, w1_ref, b1_ref, w2_ref, b2_ref, w3_ref, b3_ref,
               w4_ref, b4_ref, wfc_ref, bfc_ref, m28_ref, m16_ref,
               s1_ref, s2_ref, o_ref, feat_scr):
        m28 = m28_ref[...]                               # (1, 1024)
        m16 = m16_ref[...]                               # (1, 256)

        a = x_ref[0]                                     # (1, 1024)
        a = conv(a, w1_ref, b1_ref, 3, 32, 1024, m28)    # (16, 1024)
        a = conv(a, w2_ref, b2_ref, 5, 32, 1024, m28)    # (8, 1024)
        a = conv(a, w3_ref, b3_ref, 3, 32, 1024, m28)    # (8, 1024)
        a = pool(a, 32, 1024, s1_ref)                    # (8, 256)
        a = conv(a, w4_ref, b4_ref, 5, 16, 256, m16)     # (16, 256)
        a = pool(a, 16, 256, s2_ref)                     # (16, 49)

        # fc1 over the (C, H*W) features == PyTorch (C,H,W) flatten order.
        feat_scr[...] = a
        acc = bfc_ref[...]                               # (1, 10)
        for c in range(16):
            acc = acc + jnp.dot(feat_scr[pl.ds(c, 1), :], wfc_ref[c],
                                preferred_element_type=jnp.float32)
        o_ref[0] = acc

    return kernel


def build_forward(neg_shift: bool):
    kernel = _make_kernel(neg_shift)

    @jax.jit
    def forward(x_nchw, packed):
        n = x_nchw.shape[0]
        # embed 28x28 in a 32x32 grid (zero border) -> flat length 1024
        xp = jnp.pad(x_nchw, ((0, 0), (0, 0), (0, 4), (0, 4)))
        xflat = xp.reshape(n, 1, 32 * 32).astype(jnp.float32)

        consts = [packed[k] for k in _PACKED_KEYS]
        in_specs = [pl.BlockSpec((1, 1, 1024), lambda i: (i, 0, 0))]
        for c in consts:
            in_specs.append(
                pl.BlockSpec(c.shape, lambda i, _nd=c.ndim: (0,) * _nd))

        out = pl.pallas_call(
            kernel,
            out_shape=jax.ShapeDtypeStruct((n, 1, 10), jnp.float32),
            grid=(n,),
            in_specs=in_specs,
            out_specs=pl.BlockSpec((1, 1, 10), lambda i: (i, 0, 0)),
            scratch_shapes=[pltpu.VMEM((16, 49), jnp.float32)],
            compiler_params=pltpu.CompilerParams(
                dimension_semantics=("parallel",)),
        )(xflat, *consts)
        return out.reshape(n, 10)

    return forward


def _roll_matches_numpy():
    """True iff pltpu.roll follows jnp.roll semantics (result[i] = x[i-shift])."""
    def k(x_ref, o_ref):
        o_ref[...] = pltpu.roll(x_ref[...], 1, axis=1)

    x = jnp.tile(jnp.arange(128, dtype=jnp.float32)[None, :], (8, 1))
    y = pl.pallas_call(
        k, out_shape=jax.ShapeDtypeStruct((8, 128), jnp.float32))(x)
    return bool(y[0, 0] == 127.0)


# ----------------------------------------------------------------------------
# Parameter packing (per-tap weight matrices, masks, pooling gather matrices)
# ----------------------------------------------------------------------------
def _valid_mask(valid, grid):
    m = np.zeros((grid, grid), np.float32)
    m[:valid, :valid] = 1.0
    return jnp.asarray(m.reshape(1, grid * grid))


def _pool_select(grid_in, grid_out, valid_out):
    s = np.zeros((grid_in * grid_in, grid_out * grid_out), np.float32)
    for h in range(valid_out):
        for w in range(valid_out):
            s[(2 * h) * grid_in + 2 * w, h * grid_out + w] = 1.0
    return jnp.asarray(s)


def pack_params(params):
    def taps(w):                      # (KH,KW,Cin,Cout) -> (KH*KW, Cout, Cin)
        kh, kw, cin, cout = w.shape
        return jnp.transpose(w, (0, 1, 3, 2)).reshape(kh * kw, cout, cin)

    return {
        "w1": taps(params["w1"]), "b1": params["b1"].reshape(-1, 1),
        "w2": taps(params["w2"]), "b2": params["b2"].reshape(-1, 1),
        "w3": taps(params["w3"]), "b3": params["b3"].reshape(-1, 1),
        "w4": taps(params["w4"]), "b4": params["b4"].reshape(-1, 1),
        "wfc": params["wfc"].reshape(16, 49, 10),   # (c, h*w, out) — torch order
        "bfc": params["bfc"].reshape(1, 10),
        "m28": _valid_mask(28, 32),
        "m16": _valid_mask(14, 16),
        "s1": _pool_select(32, 16, 14),             # 28x28 -> 14x14 gather
        "s2": _pool_select(16, 7, 7),               # 14x14 -> 7x7 gather
    }


# ----------------------------------------------------------------------------
# Deterministic init (torch-style uniform(-1/sqrt(fan_in), 1/sqrt(fan_in)))
# ----------------------------------------------------------------------------
def _init_conv(key, kh, kw, cin, cout):
    k1, k2 = jax.random.split(key)
    bound = 1.0 / math.sqrt(cin * kh * kw)
    w = jax.random.uniform(k1, (kh, kw, cin, cout), jnp.float32, -bound, bound)
    b = jax.random.uniform(k2, (cout,), jnp.float32, -bound, bound)
    return w, b


def _init_linear(key, cin, cout):
    k1, k2 = jax.random.split(key)
    bound = 1.0 / math.sqrt(cin)
    w = jax.random.uniform(k1, (cin, cout), jnp.float32, -bound, bound)
    b = jax.random.uniform(k2, (cout,), jnp.float32, -bound, bound)
    return w, b


def make_params(key):
    ks = jax.random.split(key, 5)
    w1, b1 = _init_conv(ks[0], 3, 3, 1, 16)
    w2, b2 = _init_conv(ks[1], 5, 5, 16, 8)
    w3, b3 = _init_conv(ks[2], 3, 3, 8, 8)
    w4, b4 = _init_conv(ks[3], 5, 5, 8, 16)
    # fc weight rows follow the PyTorch (C,H,W) flatten order.
    wfc, bfc = _init_linear(ks[4], 16 * 7 * 7, 10)
    return dict(w1=w1, b1=b1, w2=w2, b2=b2, w3=w3, b3=b3, w4=w4, b4=b4,
                wfc=wfc, bfc=bfc)


# ----------------------------------------------------------------------------
# Pure-JAX reference (same (C,H,W) flatten convention as the kernel / PyTorch)
# ----------------------------------------------------------------------------
def _ref_forward(x_nchw, p):
    x = jnp.transpose(x_nchw, (0, 2, 3, 1))
    dn = ("NHWC", "HWIO", "NHWC")

    def conv(x, w, b):
        y = lax.conv_general_dilated(x, w, (1, 1), "SAME",
                                     dimension_numbers=dn,
                                     precision=lax.Precision.HIGHEST)
        return jax.nn.relu(y + b)

    def pool(x):
        return lax.reduce_window(x, -jnp.inf, lax.max,
                                 (1, 2, 2, 1), (1, 2, 2, 1), "VALID")

    x = conv(x, p["w1"], p["b1"])
    x = conv(x, p["w2"], p["b2"])
    x = pool(conv(x, p["w3"], p["b3"]))
    x = pool(conv(x, p["w4"], p["b4"]))
    n = x.shape[0]
    x = jnp.transpose(x, (0, 3, 1, 2)).reshape(n, 16 * 7 * 7)   # (C,H,W) flatten
    return jnp.dot(x, p["wfc"], precision=lax.Precision.HIGHEST) + p["bfc"]


# ----------------------------------------------------------------------------
if __name__ == "__main__":
    key = jax.random.PRNGKey(0)
    k_x, k_p = jax.random.split(key)

    # Input consistent with the module: N=2 MNIST-shaped images, NCHW.
    x = jax.random.normal(k_x, (2, 1, 28, 28), dtype=jnp.float32)
    params = make_params(k_p)
    packed = pack_params(params)

    fwd = build_forward(_roll_matches_numpy())
    out = jax.block_until_ready(fwd(x, packed))
    assert out.shape == (2, 10), out.shape

    ref = jax.block_until_ready(_ref_forward(x, params))
    max_err = float(jnp.max(jnp.abs(out - ref)))
    assert jnp.allclose(out, ref, rtol=5e-4, atol=5e-4), max_err

    print("KERNEL_OK")
</pallas_src>

<mosaic_0001>
module attributes {stable_mosaic.version = 11 : i64} {
  func.func @k(%arg0: memref<8x128xf32, #tpu.memory_space<vmem>>, %arg1: memref<8x128xf32, #tpu.memory_space<vmem>>) attributes {dimension_semantics = [], scalar_prefetch = 0 : i64, scratch_operands = 0 : i64, tpu.core_type = #tpu.core_type<tc>} {
    %c0 = arith.constant 0 : index
    %c0_0 = arith.constant 0 : index
    %0 = vector.load %arg0[%c0, %c0_0] : memref<8x128xf32, #tpu.memory_space<vmem>>, vector<8x128xf32>
    %c1_i32 = arith.constant 1 : i32
    %1 = tpu.dynamic_rotate %0 by %c1_i32 dim 1 : vector<8x128xf32>, i32 -> vector<8x128xf32>
    %c0_1 = arith.constant 0 : index
    %c0_2 = arith.constant 0 : index
    %2 = vector.load %arg1[%c0_1, %c0_2] : memref<8x128xf32, #tpu.memory_space<vmem>>, vector<8x128xf32>
    tpu.vector_store %arg1[%c0_1, %c0_2], %1 {strides = array<i32>} : memref<8x128xf32, #tpu.memory_space<vmem>>, vector<8x128xf32>,
    return
  }
}

</mosaic_0001>

<llo_original>
// kernel: tpu_custom_call.1
$region0: #{tpu_custom_call.1}
  #allocation0 [shape = 'u32[]', space=smem, size = 0x4, offset = 0x4, fixed_abs, tag = 'smem constant byte address 0x4 - core index']
  #allocation1 [shape = 'u32[144,128]{1,0:T(1,128)}', space=vmem, size = 0x12000, scoped, tag = 'internal scratch']
  %s0 = inlined_call_operand.hbm [shape: f32[8,128], index: 0, kind: input, shape index: {}]
  %s1 = inlined_call_operand.hbm [shape: f32[8,128], index: 1, kind: output, shape index: {}]
  %s2 = sld [smem:[#allocation0]]
  $region18: #{tpu_custom_call.1} parent=0
    _
  %s4 = ssub.s32 1, %s2
  %s5 = scalar_select 0, %s4, %s2
  $region1: #{tpu_custom_call.1} parent=0
    #allocation2 [shape = 'u8[4096]{0}', space=vmem, size = 0x1000, scoped, tag = 'input window, operand 0, single buffered']
    #allocation3 [shape = 's32[1]{0}', space=sflag, size = 0x4, scoped, tag = 'scoped memory for tpu_custom_call.1']
    #allocation4 [shape = 's32[1]{0}', space=sflag, size = 0x4, scoped, tag = 'scoped memory for tpu_custom_call.1']
    #allocation5 [shape = 'u8[4096]{0}', space=vmem, size = 0x1000, scoped, tag = 'output window, operand 0, single buffered']
    %6 = vsyncpa [#allocation3], 0
    %7 = vsyncpa [#allocation4], 0
    // Predicated region
    $region2: #{tpu_custom_call.1} parent=1 // pred_check
      _
    $region3: #{tpu_custom_call.1} parent=1 // pred_check_branch
      %9 = sbr.rel (0) target = $region5
    $region4: #{tpu_custom_call.1} parent=1 // pred_region
      %s11 = ssub.s32 128, 128
      %12 = vsyncadd [#allocation3], %s11
      %s14 = sshll.u32 [#allocation2], 4
      %s15 = int_to_ptr.vmem [resolvable:$true] %s14
      %17 = dma.hbm_to_vmem [thread:$0]  %s0, 128, %s15, [#allocation3]
    $region5: #{tpu_custom_call.1} parent=1 // pred_fallthru
      _
    // Predicated region
    $region6: #{tpu_custom_call.1} parent=1 // pred_check
      _
    $region7: #{tpu_custom_call.1} parent=1 // pred_check_branch
      %19 = sbr.rel (0) target = $region9
    $region8: #{tpu_custom_call.1} parent=1 // pred_region
      %20 = dma.done [#allocation3], 128
    $region9: #{tpu_custom_call.1} parent=1 // pred_fallthru
      _
    %v21 = vld [vmem:[#allocation2] sm:$0xff]
    %22 = vrot.lane.b32.xlu0 %v21, 1
    %v23 = vpop.permute.xlu0 %22
    %24 = vst [vmem:[#allocation5] sm:$0xff] %v23
    // Predicated region
    $region10: #{tpu_custom_call.1} parent=1 // pred_check
      _
    $region11: #{tpu_custom_call.1} parent=1 // pred_check_branch
      %26 = sbr.rel (0) target = $region13
    $region12: #{tpu_custom_call.1} parent=1 // pred_region
      %s28 = ssub.s32 128, 128
      %29 = vsyncadd [#allocation4], %s28
      %s31 = sshll.u32 [#allocation5], 4
      %s32 = int_to_ptr.vmem [resolvable:$true] %s31
      %34 = dma.vmem_to_hbm [thread:$0]  %s32, 128, %s1, [#allocation4]
    $region13: #{tpu_custom_call.1} parent=1 // pred_fallthru
      _
    // Predicated region
    $region14: #{tpu_custom_call.1} parent=1 // pred_check
      _
    $region15: #{tpu_custom_call.1} parent=1 // pred_check_branch
      %36 = sbr.rel (0) target = $region17
    $region16: #{tpu_custom_call.1} parent=1 // pred_region
      %37 = dma.done [#allocation4], 128
    $region17: #{tpu_custom_call.1} parent=1 // pred_fallthru
      _
    %38 = vsyncpa [#allocation3], 1
    %39 = vsyncpa [#allocation4], 1

</llo_original>
